<compile_context>
chip_gen: v7x
topology: tpu7x:2x2x1
jax: 0.10.0
libtpu: 0.0.40
codegen_flags: <defaults>
</compile_context>

<pallas_src>
import jax
import jax.numpy as jnp
from jax import lax
from jax.experimental import pallas as pl
from jax.experimental.pallas import tpu as pltpu


_LN_EPS = 1e-5
_INV_SQRT2 = 0.7071067811865476  # 1/sqrt(2)


def _rsa_head_kernel(x_ref, w1_ref, b1_ref, gamma_ref, beta_ref,
                     w2_ref, b2_ref, out_ref, h_ref):
    # grid = (i: token tiles [parallel], j: decoder output tiles [arbitrary])
    # x_ref:      (TM, H)   producer dtype (f32); cast to bf16 in-kernel
    # w1_ref:     (H, E)    bf16          b1/gamma/beta: (1, E) f32
    # w2_ref:     (E, TN)   bf16          b2: (1, TN) f32
    # out_ref:    (TM, TN)  bf16
    # h_ref:      (TM, E)   bf16 scratch, persists across the inner j loop

    @pl.when(pl.program_id(1) == 0)
    def _compute_hidden():
        # dense: bf16 operands -> f32 accumulate on the MXU
        x = x_ref[...].astype(jnp.bfloat16)
        h = jnp.dot(x, w1_ref[...],
                    preferred_element_type=jnp.float32) + b1_ref[...]
        # exact GELU (torch nn.GELU() default): 0.5*x*(1+erf(x/sqrt(2)))
        h = 0.5 * h * (1.0 + lax.erf(h * jnp.float32(_INV_SQRT2)))
        # LayerNorm over the (unpadded) embedding dim, f32 epilogue
        mean = jnp.mean(h, axis=-1, keepdims=True)
        centered = h - mean
        var = jnp.mean(centered * centered, axis=-1, keepdims=True)
        normed = (centered * lax.rsqrt(var + jnp.float32(_LN_EPS))
                  * gamma_ref[...] + beta_ref[...])
        h_ref[...] = normed.astype(h_ref.dtype)

    # decoder tile: bf16 operands -> f32 accumulate on the MXU
    logits = jnp.dot(h_ref[...], w2_ref[...],
                     preferred_element_type=jnp.float32) + b2_ref[...]
    # sigmoid(x) = 0.5 + 0.5*tanh(x/2): single EUP push, exact
    out_ref[...] = (0.5 + 0.5 * jnp.tanh(0.5 * logits)).astype(out_ref.dtype)


def _round_up(x, m):
    return (x + m - 1) // m * m


def _vmem_capacity_bytes():
    try:
        info = pltpu.get_tpu_info()
        cap = int(getattr(info, "vmem_capacity_bytes", 0) or 0)
    except Exception:
        cap = 0
    if cap <= 0:
        cap = 64 * 1024 * 1024  # conservative default (v7x per-TC VMEM)
    return cap


def init_params(key, hidden_size, embedding_size, max_position_embeddings):
    """Deterministic synthetic f32 parameters (not a checkpoint load)."""
    out_size = max_position_embeddings // 2
    k1, k2, k3 = jax.random.split(key, 3)
    w1 = (jax.random.normal(k1, (hidden_size, embedding_size), jnp.float32)
          * (1.0 / jnp.sqrt(hidden_size)))
    b1 = jax.random.normal(k2, (1, embedding_size), jnp.float32) * 0.02
    gamma = jnp.ones((1, embedding_size), jnp.float32)   # nn.LayerNorm weight
    beta = jnp.zeros((1, embedding_size), jnp.float32)   # nn.LayerNorm bias
    w2 = (jax.random.normal(k3, (embedding_size, out_size), jnp.float32)
          * (1.0 / jnp.sqrt(embedding_size)))
    b2 = jnp.zeros((1, out_size), jnp.float32)            # self.bias = zeros
    return {"w1": w1, "b1": b1, "gamma": gamma, "beta": beta,
            "w2": w2, "b2": b2}


def prepare_params(params, mxu_dtype=jnp.bfloat16):
    """One-time conversion to kernel layout.

    Casts the matmul weights to bf16 and pads the decoder output dim up to a
    multiple of 128 (lane-dense stores). Do this once at setup, not per call,
    so no per-call HBM cast/pad passes remain.
    NOTE: the embedding dim E is intentionally NOT lane-padded — LayerNorm
    statistics are taken over it, so zero-padding would bias mean/var.
    """
    w2, b2 = params["w2"], params["b2"]
    out_features = w2.shape[1]
    o_pad = _round_up(out_features, 128)
    if o_pad != out_features:
        w2 = jnp.pad(w2, ((0, 0), (0, o_pad - out_features)))
        b2 = jnp.pad(b2, ((0, 0), (0, o_pad - out_features)))
    return {
        "w1": params["w1"].astype(mxu_dtype),
        "b1": params["b1"].astype(jnp.float32),
        "gamma": params["gamma"].astype(jnp.float32),
        "beta": params["beta"].astype(jnp.float32),
        "w2": w2.astype(mxu_dtype),
        "b2": b2.astype(jnp.float32),
        "out_features": out_features,
    }


def rsa_head(hidden_states, params, *, out_dtype=jnp.bfloat16):
    """hidden_states: [B, S, hidden]. params: output of prepare_params().
    Returns [B, S, max_pos//2] in out_dtype (bf16 by default)."""
    B, S, H = hidden_states.shape
    M = B * S
    w1, b1 = params["w1"], params["b1"]
    gamma, beta = params["gamma"], params["beta"]
    w2, b2 = params["w2"], params["b2"]
    O = params["out_features"]
    E = w1.shape[1]
    O_pad = w2.shape[1]

    # ---- generation-aware sizing ---------------------------------------
    vmem_cap = _vmem_capacity_bytes()
    big_vmem = vmem_cap >= 100 * 1024 * 1024       # v5e/v6e: 128 MiB; v7x: 64 MiB/TC
    tm_max = 512 if big_vmem else 256
    vmem_limit = (96 if big_vmem else 48) * 1024 * 1024

    # Token tile: multiple of 16 (bf16 sublane packing of h / out), capped by
    # tm_max. If everything would fit one tile, split it so the grid has >= 2
    # steps and v7x megacore ("parallel" axis) can use both TensorCores.
    tm = min(tm_max, _round_up(M, 16))
    if tm >= 32 and _round_up(M, tm) == tm:
        tm = _round_up((M + 1) // 2, 16)
    M_pad = _round_up(M, tm)

    # Decoder output tile: largest multiple of 128 dividing O_pad such that
    # the w2 block + double-buffered out tile stay within ~half the VMEM cap.
    out_itemsize = jnp.dtype(out_dtype).itemsize
    per_col = 2 * E * w2.dtype.itemsize + 2 * tm * out_itemsize + 4
    tn_budget = max(128, (vmem_limit // 2 // per_col) // 128 * 128)
    q = O_pad // 128
    d = 1
    for cand in range(1, q + 1):
        if q % cand == 0 and 128 * cand <= tn_budget:
            d = cand
    tn = 128 * d
    n_n = O_pad // tn

    # ---- inputs: keep producer dtype, pad rows only if required --------
    x2d = hidden_states.reshape(M, H)
    if M_pad != M:
        x2d = jnp.pad(x2d, ((0, M_pad - M), (0, 0)))  # zero rows, sliced off

    grid = (M_pad // tm, n_n)

    def build(single_buffer_consts):
        # Constant operands (index_map always (0,0)) do not need double
        # buffers; halving their footprint matters under v7x's 64 MiB/TC.
        const_mode = ({"pipeline_mode": pl.Buffered(1)}
                      if single_buffer_consts else {})
        return pl.pallas_call(
            _rsa_head_kernel,
            out_shape=jax.ShapeDtypeStruct((M_pad, O_pad), out_dtype),
            grid_spec=pltpu.PrefetchScalarGridSpec(
                num_scalar_prefetch=0,
                grid=grid,
                in_specs=[
                    pl.BlockSpec((tm, H), lambda i, j: (i, 0)),   # x tile (pipelined)
                    pl.BlockSpec((H, E), lambda i, j: (0, 0), **const_mode),
                    pl.BlockSpec((1, E), lambda i, j: (0, 0), **const_mode),
                    pl.BlockSpec((1, E), lambda i, j: (0, 0), **const_mode),
                    pl.BlockSpec((1, E), lambda i, j: (0, 0), **const_mode),
                    pl.BlockSpec((E, tn), lambda i, j: (0, j)),   # decoder N tile
                    pl.BlockSpec((1, tn), lambda i, j: (0, j)),
                ],
                out_specs=pl.BlockSpec((tm, tn), lambda i, j: (i, j)),
                scratch_shapes=[pltpu.VMEM((tm, E), jnp.bfloat16)],  # LN(h) cache
            ),
            compiler_params=pltpu.CompilerParams(
                # token tiles independent -> megacore sharding; decoder-N axis
                # reuses the per-tile scratch -> arbitrary (sequential, inner).
                dimension_semantics=("parallel", "arbitrary"),
                vmem_limit_bytes=vmem_limit,
            ),
        )

    try:
        out2d = build(True)(x2d, w1, b1, gamma, beta, w2, b2)
    except Exception:
        # pipeline_mode=pl.Buffered(1) not supported by this JAX/Mosaic build
        # for top-level pallas_call operands -> default double buffering.
        out2d = build(False)(x2d, w1, b1, gamma, beta, w2, b2)

    return out2d[:M, :O].reshape(B, S, O)


def _reference(hidden_states, p):
    # pure-f32 reference of the PyTorch forward (original f32 params)
    x = hidden_states.astype(jnp.float32)
    h = x @ p["w1"] + p["b1"][0]
    h = 0.5 * h * (1.0 + lax.erf(h / jnp.sqrt(2.0)))
    mean = jnp.mean(h, -1, keepdims=True)
    var = jnp.mean((h - mean) ** 2, -1, keepdims=True)
    h = (h - mean) * lax.rsqrt(var + _LN_EPS) * p["gamma"][0] + p["beta"][0]
    logits = h @ p["w2"] + p["b2"][0]
    return jax.nn.sigmoid(logits)


if __name__ == "__main__":
    # config: hidden_size=32, embedding_size=64, max_position_embeddings=128
    B, S, HIDDEN, EMBED, MAXPOS = 2, 8, 32, 64, 128

    key = jax.random.PRNGKey(0)
    kx, kp = jax.random.split(key)
    x = jax.random.normal(kx, (B, S, HIDDEN), jnp.float32)
    params_f32 = init_params(kp, HIDDEN, EMBED, MAXPOS)
    kernel_params = prepare_params(params_f32)   # one-time bf16/pad conversion

    out = rsa_head(x, kernel_params)
    out = jax.block_until_ready(out)

    ref = _reference(x, params_f32)
    assert out.shape == (B, S, MAXPOS // 2), out.shape
    # bf16 MXU operands (f32 accumulate) + bf16 output -> loosened tolerance
    err = float(jnp.max(jnp.abs(out.astype(jnp.float32) - ref)))
    assert err < 2e-2, err
    print("KERNEL_OK")
</pallas_src>

<mosaic_0001>
module attributes {stable_mosaic.version = 11 : i64} {
  func.func @_rsa_head_kernel(%arg0: i32, %arg1: i32, %arg2: memref<16x32xf32, #tpu.memory_space<vmem>>, %arg3: memref<32x64xbf16, #tpu.memory_space<vmem>>, %arg4: memref<1x64xf32, #tpu.memory_space<vmem>>, %arg5: memref<1x64xf32, #tpu.memory_space<vmem>>, %arg6: memref<1x64xf32, #tpu.memory_space<vmem>>, %arg7: memref<64x128xbf16, #tpu.memory_space<vmem>>, %arg8: memref<1x128xf32, #tpu.memory_space<vmem>>, %arg9: memref<16x128xbf16, #tpu.memory_space<vmem>>, %arg10: memref<16x64xbf16, #tpu.memory_space<vmem>>) attributes {dimension_semantics = [#tpu.dimension_semantics<parallel>, #tpu.dimension_semantics<arbitrary>], iteration_bounds = array<i64: 1, 1>, scalar_prefetch = 0 : i64, scratch_operands = 1 : i64, tpu.core_type = #tpu.core_type<tc>, window_params = [{transform_indices = @transform_0, window_bounds = array<i64: 16, 32>}, {pipeline_mode = #tpu.pipeline_mode<synchronous>, transform_indices = @transform_1, window_bounds = array<i64: 32, 64>}, {pipeline_mode = #tpu.pipeline_mode<synchronous>, transform_indices = @transform_2, window_bounds = array<i64: 1, 64>}, {pipeline_mode = #tpu.pipeline_mode<synchronous>, transform_indices = @transform_3, window_bounds = array<i64: 1, 64>}, {pipeline_mode = #tpu.pipeline_mode<synchronous>, transform_indices = @transform_4, window_bounds = array<i64: 1, 64>}, {transform_indices = @transform_5, window_bounds = array<i64: 64, 128>}, {transform_indices = @transform_6, window_bounds = array<i64: 1, 128>}, {transform_indices = @transform_7, window_bounds = array<i64: 16, 128>}]} {
    %c0_i32 = arith.constant 0 : i32
    %0 = arith.cmpi eq, %arg1, %c0_i32 : i32
    %1 = arith.extui %0 : i1 to i32
    %c0_i32_0 = arith.constant 0 : i32
    %2 = arith.cmpi ne, %1, %c0_i32_0 : i32
    scf.if %2 {
      %c0_11 = arith.constant 0 : index
      %c0_12 = arith.constant 0 : index
      %18 = vector.load %arg2[%c0_11, %c0_12] : memref<16x32xf32, #tpu.memory_space<vmem>>, vector<16x32xf32>
      %19 = arith.truncf %18 : vector<16x32xf32> to vector<16x32xbf16>
      %c0_13 = arith.constant 0 : index
      %c0_14 = arith.constant 0 : index
      %20 = vector.load %arg3[%c0_13, %c0_14] : memref<32x64xbf16, #tpu.memory_space<vmem>>, vector<32x64xbf16>
      %cst_15 = arith.constant dense<0.000000e+00> : vector<16x64xf32>
      %21 = tpu.matmul %19, %20, %cst_15 {dimension_numbers = #tpu.dot_dimension_numbers<[1], [0], [0], [1], [0, 0, 1, 1], [], []>} : vector<16x32xbf16>, vector<32x64xbf16>, vector<16x64xf32> -> vector<16x64xf32>
      %c0_16 = arith.constant 0 : index
      %c0_17 = arith.constant 0 : index
      %22 = vector.load %arg4[%c0_16, %c0_17] : memref<1x64xf32, #tpu.memory_space<vmem>>, vector<1x64xf32>
      %23 = vector.broadcast %22 : vector<1x64xf32> to vector<16x64xf32>
      %24 = arith.addf %21, %23 : vector<16x64xf32>
      %cst_18 = arith.constant 5.000000e-01 : f32
      %25 = vector.broadcast %cst_18 : f32 to vector<16x64xf32>
      %26 = arith.mulf %25, %24 : vector<16x64xf32>
      %cst_19 = arith.constant 0.707106769 : f32
      %27 = vector.broadcast %cst_19 : f32 to vector<16x64xf32>
      %28 = arith.mulf %24, %27 : vector<16x64xf32>
      %29 = math.erf %28 : vector<16x64xf32>
      %cst_20 = arith.constant 1.000000e+00 : f32
      %30 = vector.broadcast %cst_20 : f32 to vector<16x64xf32>
      %31 = arith.addf %30, %29 : vector<16x64xf32>
      %32 = arith.mulf %26, %31 : vector<16x64xf32>
      %cst_21 = arith.constant dense<0.000000e+00> : vector<16xf32>
      %33 = vector.multi_reduction <add>, %32, %cst_21 [1] : vector<16x64xf32> to vector<16xf32>
      %34 = vector.shape_cast %33 : vector<16xf32> to vector<16x1xf32>
      %cst_22 = arith.constant 6.400000e+01 : f32
      %35 = vector.broadcast %cst_22 : f32 to vector<16x1xf32>
      %36 = arith.divf %34, %35 : vector<16x1xf32>
      %37 = vector.broadcast %36 : vector<16x1xf32> to vector<16x64xf32>
      %38 = arith.subf %32, %37 : vector<16x64xf32>
      %39 = arith.mulf %38, %38 : vector<16x64xf32>
      %cst_23 = arith.constant dense<0.000000e+00> : vector<16xf32>
      %40 = vector.multi_reduction <add>, %39, %cst_23 [1] : vector<16x64xf32> to vector<16xf32>
      %41 = vector.shape_cast %40 : vector<16xf32> to vector<16x1xf32>
      %cst_24 = arith.constant 6.400000e+01 : f32
      %42 = vector.broadcast %cst_24 : f32 to vector<16x1xf32>
      %43 = arith.divf %41, %42 : vector<16x1xf32>
      %cst_25 = arith.constant 9.99999974E-6 : f32
      %44 = vector.broadcast %cst_25 : f32 to vector<16x1xf32>
      %45 = arith.addf %43, %44 : vector<16x1xf32>
      %46 = math.rsqrt %45 : vector<16x1xf32>
      %47 = vector.broadcast %46 : vector<16x1xf32> to vector<16x64xf32>
      %48 = arith.mulf %38, %47 : vector<16x64xf32>
      %c0_26 = arith.constant 0 : index
      %c0_27 = arith.constant 0 : index
      %49 = vector.load %arg5[%c0_26, %c0_27] : memref<1x64xf32, #tpu.memory_space<vmem>>, vector<1x64xf32>
      %50 = vector.broadcast %49 : vector<1x64xf32> to vector<16x64xf32>
      %51 = arith.mulf %48, %50 : vector<16x64xf32>
      %c0_28 = arith.constant 0 : index
      %c0_29 = arith.constant 0 : index
      %52 = vector.load %arg6[%c0_28, %c0_29] : memref<1x64xf32, #tpu.memory_space<vmem>>, vector<1x64xf32>
      %53 = vector.broadcast %52 : vector<1x64xf32> to vector<16x64xf32>
      %54 = arith.addf %51, %53 : vector<16x64xf32>
      %55 = arith.truncf %54 : vector<16x64xf32> to vector<16x64xbf16>
      %c0_30 = arith.constant 0 : index
      %c0_31 = arith.constant 0 : index
      %56 = vector.load %arg10[%c0_30, %c0_31] : memref<16x64xbf16, #tpu.memory_space<vmem>>, vector<16x64xbf16>
      tpu.vector_store %arg10[%c0_30, %c0_31], %55 {strides = array<i32>} : memref<16x64xbf16, #tpu.memory_space<vmem>>, vector<16x64xbf16>,
    } else {
    }
    %c0 = arith.constant 0 : index
    %c0_1 = arith.constant 0 : index
    %3 = vector.load %arg10[%c0, %c0_1] : memref<16x64xbf16, #tpu.memory_space<vmem>>, vector<16x64xbf16>
    %c0_2 = arith.constant 0 : index
    %c0_3 = arith.constant 0 : index
    %4 = vector.load %arg7[%c0_2, %c0_3] : memref<64x128xbf16, #tpu.memory_space<vmem>>, vector<64x128xbf16>
    %cst = arith.constant dense<0.000000e+00> : vector<16x128xf32>
    %5 = tpu.matmul %3, %4, %cst {dimension_numbers = #tpu.dot_dimension_numbers<[1], [0], [0], [1], [0, 0, 1, 1], [], []>} : vector<16x64xbf16>, vector<64x128xbf16>, vector<16x128xf32> -> vector<16x128xf32>
    %c0_4 = arith.constant 0 : index
    %c0_5 = arith.constant 0 : index
    %6 = vector.load %arg8[%c0_4, %c0_5] : memref<1x128xf32, #tpu.memory_space<vmem>>, vector<1x128xf32>
    %7 = vector.broadcast %6 : vector<1x128xf32> to vector<16x128xf32>
    %8 = arith.addf %5, %7 : vector<16x128xf32>
    %cst_6 = arith.constant 5.000000e-01 : f32
    %9 = vector.broadcast %cst_6 : f32 to vector<16x128xf32>
    %10 = arith.mulf %9, %8 : vector<16x128xf32>
    %11 = math.tanh %10 : vector<16x128xf32>
    %cst_7 = arith.constant 5.000000e-01 : f32
    %12 = vector.broadcast %cst_7 : f32 to vector<16x128xf32>
    %13 = arith.mulf %12, %11 : vector<16x128xf32>
    %cst_8 = arith.constant 5.000000e-01 : f32
    %14 = vector.broadcast %cst_8 : f32 to vector<16x128xf32>
    %15 = arith.addf %14, %13 : vector<16x128xf32>
    %16 = arith.truncf %15 : vector<16x128xf32> to vector<16x128xbf16>
    %c0_9 = arith.constant 0 : index
    %c0_10 = arith.constant 0 : index
    %17 = vector.load %arg9[%c0_9, %c0_10] : memref<16x128xbf16, #tpu.memory_space<vmem>>, vector<16x128xbf16>
    tpu.vector_store %arg9[%c0_9, %c0_10], %16 {strides = array<i32>} : memref<16x128xbf16, #tpu.memory_space<vmem>>, vector<16x128xbf16>,
    return
  }
  func.func @transform_0(%arg0: i32, %arg1: i32) -> (i32, i32) {
    %c0_i32 = arith.constant 0 : i32
    %c0_i32_0 = arith.constant 0 : i32
    return %arg0, %c0_i32 : i32, i32
  }
  func.func @transform_1(%arg0: i32, %arg1: i32) -> (i32, i32) {
    %c0_i32 = arith.constant 0 : i32
    %c0_i32_0 = arith.constant 0 : i32
    %c0_i32_1 = arith.constant 0 : i32
    return %c0_i32, %c0_i32_0 : i32, i32
  }
  func.func @transform_2(%arg0: i32, %arg1: i32) -> (i32, i32) {
    %c0_i32 = arith.constant 0 : i32
    %c0_i32_0 = arith.constant 0 : i32
    %c0_i32_1 = arith.constant 0 : i32
    return %c0_i32, %c0_i32_0 : i32, i32
  }
  func.func @transform_3(%arg0: i32, %arg1: i32) -> (i32, i32) {
    %c0_i32 = arith.constant 0 : i32
    %c0_i32_0 = arith.constant 0 : i32
    %c0_i32_1 = arith.constant 0 : i32
    return %c0_i32, %c0_i32_0 : i32, i32
  }
  func.func @transform_4(%arg0: i32, %arg1: i32) -> (i32, i32) {
    %c0_i32 = arith.constant 0 : i32
    %c0_i32_0 = arith.constant 0 : i32
    %c0_i32_1 = arith.constant 0 : i32
    return %c0_i32, %c0_i32_0 : i32, i32
  }
  func.func @transform_5(%arg0: i32, %arg1: i32) -> (i32, i32) {
    %c0_i32 = arith.constant 0 : i32
    %c0_i32_0 = arith.constant 0 : i32
    return %c0_i32, %arg1 : i32, i32
  }
  func.func @transform_6(%arg0: i32, %arg1: i32) -> (i32, i32) {
    %c0_i32 = arith.constant 0 : i32
    %c0_i32_0 = arith.constant 0 : i32
    return %c0_i32, %arg1 : i32, i32
  }
  func.func @transform_7(%arg0: i32, %arg1: i32) -> (i32, i32) {
    %c0_i32 = arith.constant 0 : i32
    return %arg0, %arg1 : i32, i32
  }
}

module attributes {stable_mosaic.version = 11 : i64} {
  func.func @_rsa_head_kernel(%arg0: i32, %arg1: i32, %arg2: memref<16x32xf32, #tpu.memory_space<vmem>>, %arg3: memref<32x64xbf16, #tpu.memory_space<vmem>>, %arg4: memref<1x64xf32, #tpu.memory_space<vmem>>, %arg5: memref<1x64xf32, #tpu.memory_space<vmem>>, %arg6: memref<1x64xf32, #tpu.memory_space<vmem>>, %arg7: memref<64x128xbf16, #tpu.memory_space<vmem>>, %arg8: memref<1x128xf32, #tpu.memory_space<vmem>>, %arg9: memref<16x128xbf16, #tpu.memory_space<vmem>>, %arg10: memref<16x64xbf16, #tpu.memory_space<vmem>>) attributes {dimension_semantics = [#tpu.dimension_semantics<parallel>, #tpu.dimension_semantics<arbitrary>], iteration_bounds = array<i64: 1, 1>, scalar_prefetch = 0 : i64, scratch_operands = 1 : i64, tpu.core_type = #tpu.core_type<tc>, window_params = [{transform_indices = @transform_0, window_bounds = array<i64: 16, 32>}, {pipeline_mode = #tpu.pipeline_mode<synchronous>, transform_indices = @transform_1, window_bounds = array<i64: 32, 64>}, {pipeline_mode = #tpu.pipeline_mode<synchronous>, transform_indices = @transform_2, window_bounds = array<i64: 1, 64>}, {pipeline_mode = #tpu.pipeline_mode<synchronous>, transform_indices = @transform_3, window_bounds = array<i64: 1, 64>}, {pipeline_mode = #tpu.pipeline_mode<synchronous>, transform_indices = @transform_4, window_bounds = array<i64: 1, 64>}, {transform_indices = @transform_5, window_bounds = array<i64: 64, 128>}, {transform_indices = @transform_6, window_bounds = array<i64: 1, 128>}, {transform_indices = @transform_7, window_bounds = array<i64: 16, 128>}]} {
    %c0_i32 = arith.constant 0 : i32
    %0 = arith.cmpi eq, %arg1, %c0_i32 : i32
    %1 = arith.extui %0 : i1 to i32
    %c0_i32_0 = arith.constant 0 : i32
    %2 = arith.cmpi ne, %1, %c0_i32_0 : i32
    scf.if %2 {
      %c0_11 = arith.constant 0 : index
      %c0_12 = arith.constant 0 : index
      %18 = vector.load %arg2[%c0_11, %c0_12] : memref<16x32xf32, #tpu.memory_space<vmem>>, vector<16x32xf32>
      %19 = arith.truncf %18 : vector<16x32xf32> to vector<16x32xbf16>
      %c0_13 = arith.constant 0 : index
      %c0_14 = arith.constant 0 : index
      %20 = vector.load %arg3[%c0_13, %c0_14] : memref<32x64xbf16, #tpu.memory_space<vmem>>, vector<32x64xbf16>
      %cst_15 = arith.constant dense<0.000000e+00> : vector<16x64xf32>
      %21 = tpu.matmul %19, %20, %cst_15 {dimension_numbers = #tpu.dot_dimension_numbers<[1], [0], [0], [1], [0, 0, 1, 1], [], []>} : vector<16x32xbf16>, vector<32x64xbf16>, vector<16x64xf32> -> vector<16x64xf32>
      %c0_16 = arith.constant 0 : index
      %c0_17 = arith.constant 0 : index
      %22 = vector.load %arg4[%c0_16, %c0_17] : memref<1x64xf32, #tpu.memory_space<vmem>>, vector<1x64xf32>
      %23 = vector.broadcast %22 : vector<1x64xf32> to vector<16x64xf32>
      %24 = arith.addf %21, %23 : vector<16x64xf32>
      %cst_18 = arith.constant 5.000000e-01 : f32
      %25 = vector.broadcast %cst_18 : f32 to vector<16x64xf32>
      %26 = arith.mulf %25, %24 : vector<16x64xf32>
      %cst_19 = arith.constant 0.707106769 : f32
      %27 = vector.broadcast %cst_19 : f32 to vector<16x64xf32>
      %28 = arith.mulf %24, %27 : vector<16x64xf32>
      %29 = math.erf %28 : vector<16x64xf32>
      %cst_20 = arith.constant 1.000000e+00 : f32
      %30 = vector.broadcast %cst_20 : f32 to vector<16x64xf32>
      %31 = arith.addf %30, %29 : vector<16x64xf32>
      %32 = arith.mulf %26, %31 : vector<16x64xf32>
      %cst_21 = arith.constant dense<0.000000e+00> : vector<16xf32>
      %33 = vector.multi_reduction <add>, %32, %cst_21 [1] : vector<16x64xf32> to vector<16xf32>
      %34 = vector.shape_cast %33 : vector<16xf32> to vector<16x1xf32>
      %cst_22 = arith.constant 6.400000e+01 : f32
      %35 = vector.broadcast %cst_22 : f32 to vector<16x1xf32>
      %36 = arith.divf %34, %35 : vector<16x1xf32>
      %37 = vector.broadcast %36 : vector<16x1xf32> to vector<16x64xf32>
      %38 = arith.subf %32, %37 : vector<16x64xf32>
      %39 = arith.mulf %38, %38 : vector<16x64xf32>
      %cst_23 = arith.constant dense<0.000000e+00> : vector<16xf32>
      %40 = vector.multi_reduction <add>, %39, %cst_23 [1] : vector<16x64xf32> to vector<16xf32>
      %41 = vector.shape_cast %40 : vector<16xf32> to vector<16x1xf32>
      %cst_24 = arith.constant 6.400000e+01 : f32
      %42 = vector.broadcast %cst_24 : f32 to vector<16x1xf32>
      %43 = arith.divf %41, %42 : vector<16x1xf32>
      %cst_25 = arith.constant 9.99999974E-6 : f32
      %44 = vector.broadcast %cst_25 : f32 to vector<16x1xf32>
      %45 = arith.addf %43, %44 : vector<16x1xf32>
      %46 = math.rsqrt %45 : vector<16x1xf32>
      %47 = vector.broadcast %46 : vector<16x1xf32> to vector<16x64xf32>
      %48 = arith.mulf %38, %47 : vector<16x64xf32>
      %c0_26 = arith.constant 0 : index
      %c0_27 = arith.constant 0 : index
      %49 = vector.load %arg5[%c0_26, %c0_27] : memref<1x64xf32, #tpu.memory_space<vmem>>, vector<1x64xf32>
      %50 = vector.broadcast %49 : vector<1x64xf32> to vector<16x64xf32>
      %51 = arith.mulf %48, %50 : vector<16x64xf32>
      %c0_28 = arith.constant 0 : index
      %c0_29 = arith.constant 0 : index
      %52 = vector.load %arg6[%c0_28, %c0_29] : memref<1x64xf32, #tpu.memory_space<vmem>>, vector<1x64xf32>
      %53 = vector.broadcast %52 : vector<1x64xf32> to vector<16x64xf32>
      %54 = arith.addf %51, %53 : vector<16x64xf32>
      %55 = arith.truncf %54 : vector<16x64xf32> to vector<16x64xbf16>
      %c0_30 = arith.constant 0 : index
      %c0_31 = arith.constant 0 : index
      %56 = vector.load %arg10[%c0_30, %c0_31] : memref<16x64xbf16, #tpu.memory_space<vmem>>, vector<16x64xbf16>
      tpu.vector_store %arg10[%c0_30, %c0_31], %55 {strides = array<i32>} : memref<16x64xbf16, #tpu.memory_space<vmem>>, vector<16x64xbf16>,
    } else {
    }
    %c0 = arith.constant 0 : index
    %c0_1 = arith.constant 0 : index
    %3 = vector.load %arg10[%c0, %c0_1] : memref<16x64xbf16, #tpu.memory_space<vmem>>, vector<16x64xbf16>
    %c0_2 = arith.constant 0 : index
    %c0_3 = arith.constant 0 : index
    %4 = vector.load %arg7[%c0_2, %c0_3] : memref<64x128xbf16, #tpu.memory_space<vmem>>, vector<64x128xbf16>
    %cst = arith.constant dense<0.000000e+00> : vector<16x128xf32>
    %5 = tpu.matmul %3, %4, %cst {dimension_numbers = #tpu.dot_dimension_numbers<[1], [0], [0], [1], [0, 0, 1, 1], [], []>} : vector<16x64xbf16>, vector<64x128xbf16>, vector<16x128xf32> -> vector<16x128xf32>
    %c0_4 = arith.constant 0 : index
    %c0_5 = arith.constant 0 : index
    %6 = vector.load %arg8[%c0_4, %c0_5] : memref<1x128xf32, #tpu.memory_space<vmem>>, vector<1x128xf32>
    %7 = vector.broadcast %6 : vector<1x128xf32> to vector<16x128xf32>
    %8 = arith.addf %5, %7 : vector<16x128xf32>
    %cst_6 = arith.constant 5.000000e-01 : f32
    %9 = vector.broadcast %cst_6 : f32 to vector<16x128xf32>
    %10 = arith.mulf %9, %8 : vector<16x128xf32>
    %11 = math.tanh %10 : vector<16x128xf32>
    %cst_7 = arith.constant 5.000000e-01 : f32
    %12 = vector.broadcast %cst_7 : f32 to vector<16x128xf32>
    %13 = arith.mulf %12, %11 : vector<16x128xf32>
    %cst_8 = arith.constant 5.000000e-01 : f32
    %14 = vector.broadcast %cst_8 : f32 to vector<16x128xf32>
    %15 = arith.addf %14, %13 : vector<16x128xf32>
    %16 = arith.truncf %15 : vector<16x128xf32> to vector<16x128xbf16>
    %c0_9 = arith.constant 0 : index
    %c0_10 = arith.constant 0 : index
    %17 = vector.load %arg9[%c0_9, %c0_10] : memref<16x128xbf16, #tpu.memory_space<vmem>>, vector<16x128xbf16>
    tpu.vector_store %arg9[%c0_9, %c0_10], %16 {strides = array<i32>} : memref<16x128xbf16, #tpu.memory_space<vmem>>, vector<16x128xbf16>,
    return
  }
  func.func @transform_0(%arg0: i32, %arg1: i32) -> (i32, i32) {
    %c0_i32 = arith.constant 0 : i32
    %c0_i32_0 = arith.constant 0 : i32
    return %arg0, %c0_i32 : i32, i32
  }
  func.func @transform_1(%arg0: i32, %arg1: i32) -> (i32, i32) {
    %c0_i32 = arith.constant 0 : i32
    %c0_i32_0 = arith.constant 0 : i32
    %c0_i32_1 = arith.constant 0 : i32
    return %c0_i32, %c0_i32_0 : i32, i32
  }
  func.func @transform_2(%arg0: i32, %arg1: i32) -> (i32, i32) {
    %c0_i32 = arith.constant 0 : i32
    %c0_i32_0 = arith.constant 0 : i32
    %c0_i32_1 = arith.constant 0 : i32
    return %c0_i32, %c0_i32_0 : i32, i32
  }
  func.func @transform_3(%arg0: i32, %arg1: i32) -> (i32, i32) {
    %c0_i32 = arith.constant 0 : i32
    %c0_i32_0 = arith.constant 0 : i32
    %c0_i32_1 = arith.constant 0 : i32
    return %c0_i32, %c0_i32_0 : i32, i32
  }
  func.func @transform_4(%arg0: i32, %arg1: i32) -> (i32, i32) {
    %c0_i32 = arith.constant 0 : i32
    %c0_i32_0 = arith.constant 0 : i32
    %c0_i32_1 = arith.constant 0 : i32
    return %c0_i32, %c0_i32_0 : i32, i32
  }
  func.func @transform_5(%arg0: i32, %arg1: i32) -> (i32, i32) {
    %c0_i32 = arith.constant 0 : i32
    %c0_i32_0 = arith.constant 0 : i32
    return %c0_i32, %arg1 : i32, i32
  }
  func.func @transform_6(%arg0: i32, %arg1: i32) -> (i32, i32) {
    %c0_i32 = arith.constant 0 : i32
    %c0_i32_0 = arith.constant 0 : i32
    return %c0_i32, %arg1 : i32, i32
  }
  func.func @transform_7(%arg0: i32, %arg1: i32) -> (i32, i32) {
    %c0_i32 = arith.constant 0 : i32
    return %arg0, %arg1 : i32, i32
  }
}

</mosaic_0001>

<llo_original>
// kernel: tpu_custom_call.1
$region0: #{tpu_custom_call.1}
  #allocation0 [shape = 'u32[]', space=smem, size = 0x4, offset = 0x4, fixed_abs, tag = 'smem constant byte address 0x4 - core index']
  #allocation1 [shape = 'u32[144,128]{1,0:T(1,128)}', space=vmem, size = 0x12000, scoped, tag = 'internal scratch']
  #allocation2 [shape = 'bf16[16,64]{1,0:T(16,128)(2,1)}', space=vmem, size = 0x1000, scoped, tag = 'scratch operand']
  %s0 = inlined_call_operand.hbm [shape: f32[16,32], index: 0, kind: input, shape index: {}]
  %s1 = inlined_call_operand.hbm [shape: bf16[32,64], index: 1, kind: input, shape index: {}]
  %s2 = inlined_call_operand.vmem [shape: f32[1,64], index: 2, kind: input, shape index: {}]
  %s3 = inlined_call_operand.vmem [shape: f32[1,64], index: 3, kind: input, shape index: {}]
  %s4 = inlined_call_operand.vmem [shape: f32[1,64], index: 4, kind: input, shape index: {}]
  %s5 = inlined_call_operand.hbm [shape: bf16[64,128], index: 5, kind: input, shape index: {}]
  %s6 = inlined_call_operand.vmem [shape: f32[1,128], index: 6, kind: input, shape index: {}]
  %s7 = inlined_call_operand.hbm [shape: bf16[16,128], index: 7, kind: output, shape index: {}]
  %s8 = sld [smem:[#allocation0]]
  $region54: #{tpu_custom_call.1} parent=0
    _
  %s10 = ssub.s32 1, %s8
  %s11 = scalar_select 0, %s10, %s8
  $region1: #{tpu_custom_call.1} parent=0
    #allocation3 [shape = 'u8[8192]{0}', space=vmem, size = 0x2000, scoped, tag = 'input window, operand 0, single buffered']
    #allocation4 [shape = 's32[1]{0}', space=sflag, size = 0x4, scoped, tag = 'scoped memory for tpu_custom_call.1']
    #allocation5 [shape = 's32[1]{0}', space=sflag, size = 0x4, scoped, tag = 'scoped memory for tpu_custom_call.1']
    #allocation6 [shape = 'u8[8192]{0}', space=vmem, size = 0x2000, scoped, tag = 'input window, operand 1, single buffered']
    #allocation7 [shape = 's32[1]{0}', space=sflag, size = 0x4, scoped, tag = 'scoped memory for tpu_custom_call.1']
    #allocation8 [shape = 'u8[16384]{0}', space=vmem, size = 0x4000, scoped, tag = 'input window, operand 5, single buffered']
    #allocation9 [shape = 'u8[4096]{0}', space=vmem, size = 0x1000, scoped, tag = 'output window, operand 0, single buffered']
    %12 = vsyncpa [#allocation4], 0
    %13 = vsyncpa [#allocation7], 0
    %14 = vsyncpa [#allocation5], 0
    // Predicated region
    $region2: #{tpu_custom_call.1} parent=1 // pred_check
      _
    $region3: #{tpu_custom_call.1} parent=1 // pred_check_branch
      %16 = sbr.rel (0) target = $region5
    $region4: #{tpu_custom_call.1} parent=1 // pred_region
      %s18 = ssub.s32 256, 256
      %19 = vsyncadd [#allocation4], %s18
      %s20 = sshll.u32 [#allocation3], 4
      %s21 = int_to_ptr.vmem [resolvable:$true] %s20
      %26 = dma.hbm_to_vmem [thread:$0]  %s0, 256, %s21, [#allocation4], 128, 128, 8
    $region5: #{tpu_custom_call.1} parent=1 // pred_fallthru
      _
    // Predicated region
    $region6: #{tpu_custom_call.1} parent=1 // pred_check
      _
    $region7: #{tpu_custom_call.1} parent=1 // pred_check_branch
      %28 = sbr.rel (0) target = $region9
    $region8: #{tpu_custom_call.1} parent=1 // pred_region
      %s30 = ssub.s32 256, 256
      %31 = vsyncadd [#allocation7], %s30
      %s32 = sshll.u32 [#allocation6], 4
      %s33 = int_to_ptr.vmem [resolvable:$true] %s32
      %38 = dma.hbm_to_vmem [thread:$0]  %s1, 256, %s33, [#allocation7], 64, 64, 4
    $region9: #{tpu_custom_call.1} parent=1 // pred_fallthru
      _
    // Predicated region
    $region10: #{tpu_custom_call.1} parent=1 // pred_check
      _
    $region11: #{tpu_custom_call.1} parent=1 // pred_check_branch
      %40 = sbr.rel (0) target = $region13
    $region12: #{tpu_custom_call.1} parent=1 // pred_region
      _
    $region13: #{tpu_custom_call.1} parent=1 // pred_fallthru
      _
    // Predicated region
    $region14: #{tpu_custom_call.1} parent=1 // pred_check
      _
    $region15: #{tpu_custom_call.1} parent=1 // pred_check_branch
      %42 = sbr.rel (0) target = $region17
    $region16: #{tpu_custom_call.1} parent=1 // pred_region
      _
    $region17: #{tpu_custom_call.1} parent=1 // pred_fallthru
      _
    // Predicated region
    $region18: #{tpu_custom_call.1} parent=1 // pred_check
      _
    $region19: #{tpu_custom_call.1} parent=1 // pred_check_branch
      %44 = sbr.rel (0) target = $region21
    $region20: #{tpu_custom_call.1} parent=1 // pred_region
      _
    $region21: #{tpu_custom_call.1} parent=1 // pred_fallthru
      _
    // Predicated region
    $region22: #{tpu_custom_call.1} parent=1 // pred_check
      _
    $region23: #{tpu_custom_call.1} parent=1 // pred_check_branch
      %46 = sbr.rel (0) target = $region25
    $region24: #{tpu_custom_call.1} parent=1 // pred_region
      %s48 = ssub.s32 512, 512
      %49 = vsyncadd [#allocation7], %s48
      %s50 = sshll.u32 [#allocation8], 4
      %s51 = int_to_ptr.vmem [resolvable:$true] %s50
      %56 = dma.hbm_to_vmem [thread:$0]  %s5, 512, %s51, [#allocation7], 64, 64, 4
    $region25: #{tpu_custom_call.1} parent=1 // pred_fallthru
      _
    // Predicated region
    $region26: #{tpu_custom_call.1} parent=1 // pred_check
      _
    $region27: #{tpu_custom_call.1} parent=1 // pred_check_branch
      %58 = sbr.rel (0) target = $region29
    $region28: #{tpu_custom_call.1} parent=1 // pred_region
      _
    $region29: #{tpu_custom_call.1} parent=1 // pred_fallthru
      _
    // Predicated region
    $region30: #{tpu_custom_call.1} parent=1 // pred_check
      _
    $region31: #{tpu_custom_call.1} parent=1 // pred_check_branch
      %60 = sbr.rel (0) target = $region33
    $region32: #{tpu_custom_call.1} parent=1 // pred_region
      %61 = dma.done [#allocation4], 256
    $region33: #{tpu_custom_call.1} parent=1 // pred_fallthru
      _
    // Predicated region
    $region34: #{tpu_custom_call.1} parent=1 // pred_check
      _
    $region35: #{tpu_custom_call.1} parent=1 // pred_check_branch
      %63 = sbr.rel (0) target = $region37
    $region36: #{tpu_custom_call.1} parent=1 // pred_region
      %64 = dma.done [#allocation7], 256
    $region37: #{tpu_custom_call.1} parent=1 // pred_fallthru
      _
    // Predicated region
    $region38: #{tpu_custom_call.1} parent=1 // pred_check
      _
    $region39: #{tpu_custom_call.1} parent=1 // pred_check_branch
      %66 = sbr.rel (0) target = $region41
    $region40: #{tpu_custom_call.1} parent=1 // pred_region
      %67 = dma.done [#allocation7], 512
    $region41: #{tpu_custom_call.1} parent=1 // pred_fallthru
      _
    %p69 = scmp.eq.s32.totalorder 0, 0
    // Predicated region
    $region42: #{tpu_custom_call.1} parent=1 // pred_check
      %p70 = pneg %p69
    $region43: #{tpu_custom_call.1} parent=1 // pred_check_branch
      %72 = sbr.rel (%p70) target = $region45
    $region44: #{tpu_custom_call.1} parent=1 // pred_region
      %v73 = vld [vmem:[#allocation3] sm:$0xff]
      %v74 = vld [vmem:[#allocation3 + $0x8] sm:$0xff]
      %v75 = vpack.c.bf16 %v74, %v73
      %v76 = vld [vmem:[#allocation6] sm:$0xf]
      %v77 = vld [vmem:[#allocation6 + $0x4] sm:$0xf]
      %v78 = vld [vmem:[#allocation6 + $0x8] sm:$0xf]
      %v79 = vld [vmem:[#allocation6 + $0xc] sm:$0xf]
      %v80 = vld [vmem:[%s2] sm:$0x1]
      %v82 = vlaneseq
      %v83 = vshrl.u32 %v82, 7
      %v84 = vsub.s32 0, %v83
      %v85 = vrot.slane %v80, %v84
      %v91 = vunpack.c.l.b16 %v76
      %v92 = vunpack.c.l.b16 %v77
      %v93 = vunpack.c.l.b16 %v78
      %v94 = vunpack.c.l.b16 %v79
      %v95 = vpack.c.b16 %v92, %v91
      %v96 = vpack.c.b16 %v94, %v93
      %vm99 = vcmask 261120
      %v101 = vsel %vm99, %v75, 0
      %103 = vmatprep.subr.bf16.mxu0 0
      %104 = vmatpush1.bf16.msra.mxu0 %v95
      %105 = vmatprep.subr.bf16.mxu0 0
      %106 = vmatpush1.bf16.msra.mxu0 %v96
      %107 = vmatprep.subr.bf16.mxu0 0
      %108 = vmatpush1.bf16.msra.mxu0 0
      %109 = vmatprep.subr.bf16.mxu0 0
      %110 = vmatpush1.bf16.msra.mxu0 0
      %111 = vmatprep.subr.bf16.mxu0 0
      %112 = vmatpush1.bf16.msra.mxu0 0
      %113 = vmatprep.subr.bf16.mxu0 0
      %114 = vmatpush1.bf16.msra.mxu0 0
      %115 = vmatprep.subr.bf16.mxu0 0
      %116 = vmatpush1.bf16.msra.mxu0 0
      %117 = vmatprep.subr.bf16.mxu0 0
      %118 = vmatpush1.bf16.msra.mxu0 0
      %119 = vmatprep.subr.bf16.mxu0 0
      %120 = vmatpush1.bf16.msra.mxu0 0
      %121 = vmatprep.subr.bf16.mxu0 0
      %122 = vmatpush1.bf16.msra.mxu0 0
      %123 = vmatprep.subr.bf16.mxu0 0
      %124 = vmatpush1.bf16.msra.mxu0 0
      %125 = vmatprep.subr.bf16.mxu0 0
      %126 = vmatpush1.bf16.msra.mxu0 0
      %127 = vmatprep.subr.bf16.mxu0 0
      %128 = vmatpush1.bf16.msra.mxu0 0
      %129 = vmatprep.subr.bf16.mxu0 0
      %130 = vmatpush1.bf16.msra.mxu0 0
      %131 = vmatprep.subr.bf16.mxu0 0
      %132 = vmatpush1.bf16.msra.mxu0 0
      %133 = vmatprep.subr.bf16.mxu0 0
      %134 = vmatpush1.bf16.msra.mxu0 0
      %135 = vmatprep.mubr.bf16.mxu0 0
      %136 = vmatmul.mubr.bf16.gmra.mrb[0].mxu0 %v101
      %v137 = vpop.f32.mrb[0].mxu0
      %v138 = vadd.f32 %v85, %v137
      %v139 = vpop.f32.mrb[0].mxu0
      %v140 = vpop.f32.mrb[0].mxu0
      %v141 = vadd.f32 %v85, %v140
      %v142 = vpop.f32.mrb[0].mxu0
      %143 = vdwg.mxu0
      %v144 = vmul.f32 %v138, 0.5
      %v145 = vmul.f32 %v141, 0.5
      %v146 = vmul.f32 %v138, 0.70710677
      %v147 = vmul.f32 %v141, 0.70710677
      %v148 = verf.f32.pop %v146
      %v149 = verf.f32.pop %v147
      %v150 = vadd.f32 %v148, 1.0
      %v151 = vadd.f32 %v149, 1.0
      %v152 = vmul.f32 %v144, %v150
      %v153 = vmul.f32 %v145, %v151
      %vm154 = vcmask 523264
      %v155 = vsel %vm154, %v152, 0.0
      %156 = vadd.xlane.f32.xlu0 %v155
      %v157 = vpop.xlane.xlu0 %156
      %v158 = vsel %vm154, %v153, 0.0
      %159 = vadd.xlane.f32.xlu0 %v158
      %v160 = vpop.xlane.xlu0 %159
      %v161 = vrcp.pop 64.0
      %v162 = vmul.f32 %v157, %v161
      %v163 = vmul.f32 %v160, %v161
      %v164 = vsub.f32 %v152, %v162
      %v165 = vsub.f32 %v153, %v163
      %v166 = vmul.f32 %v164, %v164
      %v167 = vmul.f32 %v165, %v165
      %v168 = vsel %vm154, %v166, 0.0
      %169 = vadd.xlane.f32.xlu0 %v168
      %v170 = vpop.xlane.xlu0 %169
      %v171 = vsel %vm154, %v167, 0.0
      %172 = vadd.xlane.f32.xlu0 %v171
      %v173 = vpop.xlane.xlu0 %172
      %v174 = vmul.f32 %v170, %v161
      %v175 = vmul.f32 %v173, %v161
      %v176 = vadd.f32 %v174, 1e-05
      %v177 = vadd.f32 %v175, 1e-05
      %v178 = vrsqrt.pop %v176
      %v179 = vrsqrt.pop %v177
      %v180 = vmul.f32 %v164, %v178
      %v181 = vmul.f32 %v165, %v179
      %v182 = vld [vmem:[%s3] sm:$0x1]
      %v184 = vlaneseq
      %v185 = vshrl.u32 %v184, 7
      %v186 = vsub.s32 0, %v185
      %v187 = vrot.slane %v182, %v186
      %v189 = vmul.f32 %v180, %v187
      %v190 = vmul.f32 %v181, %v187
      %v191 = vld [vmem:[%s4] sm:$0x1]
      %v193 = vlaneseq
      %v194 = vshrl.u32 %v193, 7
      %v195 = vsub.s32 0, %v194
      %v196 = vrot.slane %v191, %v195
      %v198 = vadd.f32 %v189, %v196
      %v199 = vadd.f32 %v190, %v196
      %v200 = vpack.c.bf16 %v199, %v198
      %201 = vst.msk [vmem:[#allocation2] sm:$0xff] %vm154, %v200
    $region45: #{tpu_custom_call.1} parent=1 // pred_fallthru
      _
    %v202 = vld [vmem:[#allocation2] sm:$0xff]
    %v203 = vld [vmem:[#allocation8] sm:$0xf]
    %v204 = vld [vmem:[#allocation8 + $0x4] sm:$0xf]
    %v205 = vld [vmem:[#allocation8 + $0x8] sm:$0xf]
    %v206 = vld [vmem:[#allocation8 + $0xc] sm:$0xf]
    %v207 = vld [vmem:[#allocation8 + $0x10] sm:$0xf]
    %v208 = vld [vmem:[#allocation8 + $0x14] sm:$0xf]
    %v209 = vld [vmem:[#allocation8 + $0x18] sm:$0xf]
    %v210 = vld [vmem:[#allocation8 + $0x1c] sm:$0xf]
    %v211 = vld [vmem:[%s6] sm:$0x1]
    %v213 = vlaneseq
    %v214 = vshrl.u32 %v213, 7
    %v215 = vsub.s32 0, %v214
    %v216 = vrot.slane %v211, %v215
    %v226 = vunpack.c.l.b16 %v203
    %v227 = vunpack.c.l.b16 %v204
    %v228 = vunpack.c.l.b16 %v205
    %v229 = vunpack.c.l.b16 %v206
    %v230 = vunpack.c.l.b16 %v207
    %v231 = vunpack.c.l.b16 %v208
    %v232 = vunpack.c.l.b16 %v209
    %v233 = vunpack.c.l.b16 %v210
    %v234 = vpack.c.b16 %v227, %v226
    %v235 = vpack.c.b16 %v229, %v228
    %v236 = vpack.c.b16 %v231, %v230
    %v237 = vpack.c.b16 %v233, %v232
    %vm242 = vcmask 523264
    %v244 = vsel %vm242, %v202, 0
    %246 = vmatprep.subr.bf16.mxu0 0
    %247 = vmatpush1.bf16.msra.mxu0 %v234
    %248 = vmatprep.subr.bf16.mxu0 0
    %249 = vmatpush1.bf16.msra.mxu0 %v235
    %250 = vmatprep.subr.bf16.mxu0 0
    %251 = vmatpush1.bf16.msra.mxu0 %v236
    %252 = vmatprep.subr.bf16.mxu0 0
    %253 = vmatpush1.bf16.msra.mxu0 %v237
    %254 = vmatprep.subr.bf16.mxu0 0
    %255 = vmatpush1.bf16.msra.mxu0 0
    %256 = vmatprep.subr.bf16.mxu0 0
    %257 = vmatpush1.bf16.msra.mxu0 0
    %258 = vmatprep.subr.bf16.mxu0 0
    %259 = vmatpush1.bf16.msra.mxu0 0
    %260 = vmatprep.subr.bf16.mxu0 0
    %261 = vmatpush1.bf16.msra.mxu0 0
    %262 = vmatprep.subr.bf16.mxu0 0
    %263 = vmatpush1.bf16.msra.mxu0 0
    %264 = vmatprep.subr.bf16.mxu0 0
    %265 = vmatpush1.bf16.msra.mxu0 0
    %266 = vmatprep.subr.bf16.mxu0 0
    %267 = vmatpush1.bf16.msra.mxu0 0
    %268 = vmatprep.subr.bf16.mxu0 0
    %269 = vmatpush1.bf16.msra.mxu0 0
    %270 = vmatprep.subr.bf16.mxu0 0
    %271 = vmatpush1.bf16.msra.mxu0 0
    %272 = vmatprep.subr.bf16.mxu0 0
    %273 = vmatpush1.bf16.msra.mxu0 0
    %274 = vmatprep.subr.bf16.mxu0 0
    %275 = vmatpush1.bf16.msra.mxu0 0
    %276 = vmatprep.subr.bf16.mxu0 0
    %277 = vmatpush1.bf16.msra.mxu0 0
    %278 = vmatprep.mubr.bf16.mxu0 0
    %279 = vmatmul.mubr.bf16.gmra.mrb[0].mxu0 %v244
    %v280 = vpop.f32.mrb[0].mxu0
    %v281 = vadd.f32 %v216, %v280
    %v282 = vpop.f32.mrb[0].mxu0
    %v283 = vpop.f32.mrb[0].mxu0
    %v284 = vadd.f32 %v216, %v283
    %v285 = vpop.f32.mrb[0].mxu0
    %286 = vdwg.mxu0
    %v287 = vmul.f32 %v281, 0.5
    %v288 = vmul.f32 %v284, 0.5
    %v289 = vtanh.pop %v287
    %v290 = vtanh.pop %v288
    %v291 = vmul.f32 %v289, 0.5
    %v292 = vmul.f32 %v290, 0.5
    %v293 = vadd.f32 %v291, 0.5
    %v294 = vadd.f32 %v292, 0.5
    %v295 = vpack.c.bf16 %v294, %v293
    %v297 = vunpack.c.l.b16 %v295
    %v298 = vunpack.c.h.b16 %v295
    %v299 = vpack.c.b16 %v297, %v297
    %v300 = vpack.c.b16 %v298, %v298
    %303 = vst [vmem:[#allocation9] sm:$0xf] %v299
    %304 = vst [vmem:[#allocation9 + $0x4] sm:$0xf] %v300
    // Predicated region
    $region46: #{tpu_custom_call.1} parent=1 // pred_check
      _
    $region47: #{tpu_custom_call.1} parent=1 // pred_check_branch
      %306 = sbr.rel (0) target = $region49
    $region48: #{tpu_custom_call.1} parent=1 // pred_region
      %s308 = ssub.s32 128, 128
      %309 = vsyncadd [#allocation5], %s308
      %s310 = sshll.u32 [#allocation9], 4
      %s311 = int_to_ptr.vmem [resolvable:$true] %s310
      %316 = dma.vmem_to_hbm [thread:$0]  %s311, 128, %s7, [#allocation5], 64, 64, 4
    $region49: #{tpu_custom_call.1} parent=1 // pred_fallthru
      _
    // Predicated region
    $region50: #{tpu_custom_call.1} parent=1 // pred_check
      _
    $region51: #{tpu_custom_call.1} parent=1 // pred_check_branch
      %318 = sbr.rel (0) target = $region53
    $region52: #{tpu_custom_call.1} parent=1 // pred_region
      %319 = dma.done [#allocation5], 128
    $region53: #{tpu_custom_call.1} parent=1 // pred_fallthru
      _
    %320 = vsyncpa [#allocation4], 1
    %321 = vsyncpa [#allocation7], 1
    %322 = vsyncpa [#allocation5], 1

// kernel: tpu_custom_call.1
$region0: #{tpu_custom_call.1}
  #allocation0 [shape = 'u32[]', space=smem, size = 0x4, offset = 0x4, fixed_abs, tag = 'smem constant byte address 0x4 - core index']
  #allocation1 [shape = 'u32[144,128]{1,0:T(1,128)}', space=vmem, size = 0x12000, scoped, tag = 'internal scratch']
  #allocation2 [shape = 'bf16[16,64]{1,0:T(16,128)(2,1)}', space=vmem, size = 0x1000, scoped, tag = 'scratch operand']
  %s0 = inlined_call_operand.hbm [shape: f32[16,32], index: 0, kind: input, shape index: {}]
  %s1 = inlined_call_operand.hbm [shape: bf16[32,64], index: 1, kind: input, shape index: {}]
  %s2 = inlined_call_operand.vmem [shape: f32[1,64], index: 2, kind: input, shape index: {}]
  %s3 = inlined_call_operand.vmem [shape: f32[1,64], index: 3, kind: input, shape index: {}]
  %s4 = inlined_call_operand.vmem [shape: f32[1,64], index: 4, kind: input, shape index: {}]
  %s5 = inlined_call_operand.hbm [shape: bf16[64,128], index: 5, kind: input, shape index: {}]
  %s6 = inlined_call_operand.vmem [shape: f32[1,128], index: 6, kind: input, shape index: {}]
  %s7 = inlined_call_operand.hbm [shape: bf16[16,128], index: 7, kind: output, shape index: {}]
  %s8 = sld [smem:[#allocation0]]
  $region54: #{tpu_custom_call.1} parent=0
    _
  %s10 = ssub.s32 1, %s8
  %s11 = scalar_select 0, %s10, %s8
  $region1: #{tpu_custom_call.1} parent=0
    #allocation3 [shape = 'u8[8192]{0}', space=vmem, size = 0x2000, scoped, tag = 'input window, operand 0, single buffered']
    #allocation4 [shape = 's32[1]{0}', space=sflag, size = 0x4, scoped, tag = 'scoped memory for tpu_custom_call.1']
    #allocation5 [shape = 's32[1]{0}', space=sflag, size = 0x4, scoped, tag = 'scoped memory for tpu_custom_call.1']
    #allocation6 [shape = 'u8[8192]{0}', space=vmem, size = 0x2000, scoped, tag = 'input window, operand 1, single buffered']
    #allocation7 [shape = 's32[1]{0}', space=sflag, size = 0x4, scoped, tag = 'scoped memory for tpu_custom_call.1']
    #allocation8 [shape = 'u8[16384]{0}', space=vmem, size = 0x4000, scoped, tag = 'input window, operand 5, single buffered']
    #allocation9 [shape = 'u8[4096]{0}', space=vmem, size = 0x1000, scoped, tag = 'output window, operand 0, single buffered']
    %12 = vsyncpa [#allocation4], 0
    %13 = vsyncpa [#allocation7], 0
    %14 = vsyncpa [#allocation5], 0
    // Predicated region
    $region2: #{tpu_custom_call.1} parent=1 // pred_check
      _
    $region3: #{tpu_custom_call.1} parent=1 // pred_check_branch
      %16 = sbr.rel (0) target = $region5
    $region4: #{tpu_custom_call.1} parent=1 // pred_region
      %s18 = ssub.s32 256, 256
      %19 = vsyncadd [#allocation4], %s18
      %s20 = sshll.u32 [#allocation3], 4
      %s21 = int_to_ptr.vmem [resolvable:$true] %s20
      %26 = dma.hbm_to_vmem [thread:$0]  %s0, 256, %s21, [#allocation4], 128, 128, 8
    $region5: #{tpu_custom_call.1} parent=1 // pred_fallthru
      _
    // Predicated region
    $region6: #{tpu_custom_call.1} parent=1 // pred_check
      _
    $region7: #{tpu_custom_call.1} parent=1 // pred_check_branch
      %28 = sbr.rel (0) target = $region9
    $region8: #{tpu_custom_call.1} parent=1 // pred_region
      %s30 = ssub.s32 256, 256
      %31 = vsyncadd [#allocation7], %s30
      %s32 = sshll.u32 [#allocation6], 4
      %s33 = int_to_ptr.vmem [resolvable:$true] %s32
      %38 = dma.hbm_to_vmem [thread:$0]  %s1, 256, %s33, [#allocation7], 64, 64, 4
    $region9: #{tpu_custom_call.1} parent=1 // pred_fallthru
      _
    // Predicated region
    $region10: #{tpu_custom_call.1} parent=1 // pred_check
      _
    $region11: #{tpu_custom_call.1} parent=1 // pred_check_branch
      %40 = sbr.rel (0) target = $region13
    $region12: #{tpu_custom_call.1} parent=1 // pred_region
      _
    $region13: #{tpu_custom_call.1} parent=1 // pred_fallthru
      _
    // Predicated region
    $region14: #{tpu_custom_call.1} parent=1 // pred_check
      _
    $region15: #{tpu_custom_call.1} parent=1 // pred_check_branch
      %42 = sbr.rel (0) target = $region17
    $region16: #{tpu_custom_call.1} parent=1 // pred_region
      _
    $region17: #{tpu_custom_call.1} parent=1 // pred_fallthru
      _
    // Predicated region
    $region18: #{tpu_custom_call.1} parent=1 // pred_check
      _
    $region19: #{tpu_custom_call.1} parent=1 // pred_check_branch
      %44 = sbr.rel (0) target = $region21
    $region20: #{tpu_custom_call.1} parent=1 // pred_region
      _
    $region21: #{tpu_custom_call.1} parent=1 // pred_fallthru
      _
    // Predicated region
    $region22: #{tpu_custom_call.1} parent=1 // pred_check
      _
    $region23: #{tpu_custom_call.1} parent=1 // pred_check_branch
      %46 = sbr.rel (0) target = $region25
    $region24: #{tpu_custom_call.1} parent=1 // pred_region
      %s48 = ssub.s32 512, 512
      %49 = vsyncadd [#allocation7], %s48
      %s50 = sshll.u32 [#allocation8], 4
      %s51 = int_to_ptr.vmem [resolvable:$true] %s50
      %56 = dma.hbm_to_vmem [thread:$0]  %s5, 512, %s51, [#allocation7], 64, 64, 4
    $region25: #{tpu_custom_call.1} parent=1 // pred_fallthru
      _
    // Predicated region
    $region26: #{tpu_custom_call.1} parent=1 // pred_check
      _
    $region27: #{tpu_custom_call.1} parent=1 // pred_check_branch
      %58 = sbr.rel (0) target = $region29
    $region28: #{tpu_custom_call.1} parent=1 // pred_region
      _
    $region29: #{tpu_custom_call.1} parent=1 // pred_fallthru
      _
    // Predicated region
    $region30: #{tpu_custom_call.1} parent=1 // pred_check
      _
    $region31: #{tpu_custom_call.1} parent=1 // pred_check_branch
      %60 = sbr.rel (0) target = $region33
    $region32: #{tpu_custom_call.1} parent=1 // pred_region
      %61 = dma.done [#allocation4], 256
    $region33: #{tpu_custom_call.1} parent=1 // pred_fallthru
      _
    // Predicated region
    $region34: #{tpu_custom_call.1} parent=1 // pred_check
      _
    $region35: #{tpu_custom_call.1} parent=1 // pred_check_branch
      %63 = sbr.rel (0) target = $region37
    $region36: #{tpu_custom_call.1} parent=1 // pred_region
      %64 = dma.done [#allocation7], 256
    $region37: #{tpu_custom_call.1} parent=1 // pred_fallthru
      _
    // Predicated region
    $region38: #{tpu_custom_call.1} parent=1 // pred_check
      _
    $region39: #{tpu_custom_call.1} parent=1 // pred_check_branch
      %66 = sbr.rel (0) target = $region41
    $region40: #{tpu_custom_call.1} parent=1 // pred_region
      %67 = dma.done [#allocation7], 512
    $region41: #{tpu_custom_call.1} parent=1 // pred_fallthru
      _
    %p69 = scmp.eq.s32.totalorder 0, 0
    // Predicated region
    $region42: #{tpu_custom_call.1} parent=1 // pred_check
      %p70 = pneg %p69
    $region43: #{tpu_custom_call.1} parent=1 // pred_check_branch
      %72 = sbr.rel (%p70) target = $region45
    $region44: #{tpu_custom_call.1} parent=1 // pred_region
      %v73 = vld [vmem:[#allocation3] sm:$0xff]
      %v74 = vld [vmem:[#allocation3 + $0x8] sm:$0xff]
      %v75 = vpack.c.bf16 %v74, %v73
      %v76 = vld [vmem:[#allocation6] sm:$0xf]
      %v77 = vld [vmem:[#allocation6 + $0x4] sm:$0xf]
      %v78 = vld [vmem:[#allocation6 + $0x8] sm:$0xf]
      %v79 = vld [vmem:[#allocation6 + $0xc] sm:$0xf]
      %v80 = vld [vmem:[%s2] sm:$0x1]
      %v82 = vlaneseq
      %v83 = vshrl.u32 %v82, 7
      %v84 = vsub.s32 0, %v83
      %v85 = vrot.slane %v80, %v84
      %v91 = vunpack.c.l.b16 %v76
      %v92 = vunpack.c.l.b16 %v77
      %v93 = vunpack.c.l.b16 %v78
      %v94 = vunpack.c.l.b16 %v79
      %v95 = vpack.c.b16 %v92, %v91
      %v96 = vpack.c.b16 %v94, %v93
      %vm99 = vcmask 261120
      %v101 = vsel %vm99, %v75, 0
      %103 = vmatprep.subr.bf16.mxu0 0
      %104 = vmatpush1.bf16.msra.mxu0 %v95
      %105 = vmatprep.subr.bf16.mxu0 0
      %106 = vmatpush1.bf16.msra.mxu0 %v96
      %107 = vmatprep.subr.bf16.mxu0 0
      %108 = vmatpush1.bf16.msra.mxu0 0
      %109 = vmatprep.subr.bf16.mxu0 0
      %110 = vmatpush1.bf16.msra.mxu0 0
      %111 = vmatprep.subr.bf16.mxu0 0
      %112 = vmatpush1.bf16.msra.mxu0 0
      %113 = vmatprep.subr.bf16.mxu0 0
      %114 = vmatpush1.bf16.msra.mxu0 0
      %115 = vmatprep.subr.bf16.mxu0 0
      %116 = vmatpush1.bf16.msra.mxu0 0
      %117 = vmatprep.subr.bf16.mxu0 0
      %118 = vmatpush1.bf16.msra.mxu0 0
      %119 = vmatprep.subr.bf16.mxu0 0
      %120 = vmatpush1.bf16.msra.mxu0 0
      %121 = vmatprep.subr.bf16.mxu0 0
      %122 = vmatpush1.bf16.msra.mxu0 0
      %123 = vmatprep.subr.bf16.mxu0 0
      %124 = vmatpush1.bf16.msra.mxu0 0
      %125 = vmatprep.subr.bf16.mxu0 0
      %126 = vmatpush1.bf16.msra.mxu0 0
      %127 = vmatprep.subr.bf16.mxu0 0
      %128 = vmatpush1.bf16.msra.mxu0 0
      %129 = vmatprep.subr.bf16.mxu0 0
      %130 = vmatpush1.bf16.msra.mxu0 0
      %131 = vmatprep.subr.bf16.mxu0 0
      %132 = vmatpush1.bf16.msra.mxu0 0
      %133 = vmatprep.subr.bf16.mxu0 0
      %134 = vmatpush1.bf16.msra.mxu0 0
      %135 = vmatprep.mubr.bf16.mxu0 0
      %136 = vmatmul.mubr.bf16.gmra.mrb[0].mxu0 %v101
      %v137 = vpop.f32.mrb[0].mxu0
      %v138 = vadd.f32 %v85, %v137
      %v139 = vpop.f32.mrb[0].mxu0
      %v140 = vpop.f32.mrb[0].mxu0
      %v141 = vadd.f32 %v85, %v140
      %v142 = vpop.f32.mrb[0].mxu0
      %143 = vdwg.mxu0
      %v144 = vmul.f32 %v138, 0.5
      %v145 = vmul.f32 %v141, 0.5
      %v146 = vmul.f32 %v138, 0.70710677
      %v147 = vmul.f32 %v141, 0.70710677
      %v148 = verf.f32.pop %v146
      %v149 = verf.f32.pop %v147
      %v150 = vadd.f32 %v148, 1.0
      %v151 = vadd.f32 %v149, 1.0
      %v152 = vmul.f32 %v144, %v150
      %v153 = vmul.f32 %v145, %v151
      %vm154 = vcmask 523264
      %v155 = vsel %vm154, %v152, 0.0
      %156 = vadd.xlane.f32.xlu0 %v155
      %v157 = vpop.xlane.xlu0 %156
      %v158 = vsel %vm154, %v153, 0.0
      %159 = vadd.xlane.f32.xlu0 %v158
      %v160 = vpop.xlane.xlu0 %159
      %v161 = vrcp.pop 64.0
      %v162 = vmul.f32 %v157, %v161
      %v163 = vmul.f32 %v160, %v161
      %v164 = vsub.f32 %v152, %v162
      %v165 = vsub.f32 %v153, %v163
      %v166 = vmul.f32 %v164, %v164
      %v167 = vmul.f32 %v165, %v165
      %v168 = vsel %vm154, %v166, 0.0
      %169 = vadd.xlane.f32.xlu0 %v168
      %v170 = vpop.xlane.xlu0 %169
      %v171 = vsel %vm154, %v167, 0.0
      %172 = vadd.xlane.f32.xlu0 %v171
      %v173 = vpop.xlane.xlu0 %172
      %v174 = vmul.f32 %v170, %v161
      %v175 = vmul.f32 %v173, %v161
      %v176 = vadd.f32 %v174, 1e-05
      %v177 = vadd.f32 %v175, 1e-05
      %v178 = vrsqrt.pop %v176
      %v179 = vrsqrt.pop %v177
      %v180 = vmul.f32 %v164, %v178
      %v181 = vmul.f32 %v165, %v179
      %v182 = vld [vmem:[%s3] sm:$0x1]
      %v184 = vlaneseq
      %v185 = vshrl.u32 %v184, 7
      %v186 = vsub.s32 0, %v185
      %v187 = vrot.slane %v182, %v186
      %v189 = vmul.f32 %v180, %v187
      %v190 = vmul.f32 %v181, %v187
      %v191 = vld [vmem:[%s4] sm:$0x1]
      %v193 = vlaneseq
      %v194 = vshrl.u32 %v193, 7
      %v195 = vsub.s32 0, %v194
      %v196 = vrot.slane %v191, %v195
      %v198 = vadd.f32 %v189, %v196
      %v199 = vadd.f32 %v190, %v196
      %v200 = vpack.c.bf16 %v199, %v198
      %201 = vst.msk [vmem:[#allocation2] sm:$0xff] %vm154, %v200
    $region45: #{tpu_custom_call.1} parent=1 // pred_fallthru
      _
    %v202 = vld [vmem:[#allocation2] sm:$0xff]
    %v203 = vld [vmem:[#allocation8] sm:$0xf]
    %v204 = vld [vmem:[#allocation8 + $0x4] sm:$0xf]
    %v205 = vld [vmem:[#allocation8 + $0x8] sm:$0xf]
    %v206 = vld [vmem:[#allocation8 + $0xc] sm:$0xf]
    %v207 = vld [vmem:[#allocation8 + $0x10] sm:$0xf]
    %v208 = vld [vmem:[#allocation8 + $0x14] sm:$0xf]
    %v209 = vld [vmem:[#allocation8 + $0x18] sm:$0xf]
    %v210 = vld [vmem:[#allocation8 + $0x1c] sm:$0xf]
    %v211 = vld [vmem:[%s6] sm:$0x1]
    %v213 = vlaneseq
    %v214 = vshrl.u32 %v213, 7
    %v215 = vsub.s32 0, %v214
    %v216 = vrot.slane %v211, %v215
    %v226 = vunpack.c.l.b16 %v203
    %v227 = vunpack.c.l.b16 %v204
    %v228 = vunpack.c.l.b16 %v205
    %v229 = vunpack.c.l.b16 %v206
    %v230 = vunpack.c.l.b16 %v207
    %v231 = vunpack.c.l.b16 %v208
    %v232 = vunpack.c.l.b16 %v209
    %v233 = vunpack.c.l.b16 %v210
    %v234 = vpack.c.b16 %v227, %v226
    %v235 = vpack.c.b16 %v229, %v228
    %v236 = vpack.c.b16 %v231, %v230
    %v237 = vpack.c.b16 %v233, %v232
    %vm242 = vcmask 523264
    %v244 = vsel %vm242, %v202, 0
    %246 = vmatprep.subr.bf16.mxu0 0
    %247 = vmatpush1.bf16.msra.mxu0 %v234
    %248 = vmatprep.subr.bf16.mxu0 0
    %249 = vmatpush1.bf16.msra.mxu0 %v235
    %250 = vmatprep.subr.bf16.mxu0 0
    %251 = vmatpush1.bf16.msra.mxu0 %v236
    %252 = vmatprep.subr.bf16.mxu0 0
    %253 = vmatpush1.bf16.msra.mxu0 %v237
    %254 = vmatprep.subr.bf16.mxu0 0
    %255 = vmatpush1.bf16.msra.mxu0 0
    %256 = vmatprep.subr.bf16.mxu0 0
    %257 = vmatpush1.bf16.msra.mxu0 0
    %258 = vmatprep.subr.bf16.mxu0 0
    %259 = vmatpush1.bf16.msra.mxu0 0
    %260 = vmatprep.subr.bf16.mxu0 0
    %261 = vmatpush1.bf16.msra.mxu0 0
    %262 = vmatprep.subr.bf16.mxu0 0
    %263 = vmatpush1.bf16.msra.mxu0 0
    %264 = vmatprep.subr.bf16.mxu0 0
    %265 = vmatpush1.bf16.msra.mxu0 0
    %266 = vmatprep.subr.bf16.mxu0 0
    %267 = vmatpush1.bf16.msra.mxu0 0
    %268 = vmatprep.subr.bf16.mxu0 0
    %269 = vmatpush1.bf16.msra.mxu0 0
    %270 = vmatprep.subr.bf16.mxu0 0
    %271 = vmatpush1.bf16.msra.mxu0 0
    %272 = vmatprep.subr.bf16.mxu0 0
    %273 = vmatpush1.bf16.msra.mxu0 0
    %274 = vmatprep.subr.bf16.mxu0 0
    %275 = vmatpush1.bf16.msra.mxu0 0
    %276 = vmatprep.subr.bf16.mxu0 0
    %277 = vmatpush1.bf16.msra.mxu0 0
    %278 = vmatprep.mubr.bf16.mxu0 0
    %279 = vmatmul.mubr.bf16.gmra.mrb[0].mxu0 %v244
    %v280 = vpop.f32.mrb[0].mxu0
    %v281 = vadd.f32 %v216, %v280
    %v282 = vpop.f32.mrb[0].mxu0
    %v283 = vpop.f32.mrb[0].mxu0
    %v284 = vadd.f32 %v216, %v283
    %v285 = vpop.f32.mrb[0].mxu0
    %286 = vdwg.mxu0
    %v287 = vmul.f32 %v281, 0.5
    %v288 = vmul.f32 %v284, 0.5
    %v289 = vtanh.pop %v287
    %v290 = vtanh.pop %v288
    %v291 = vmul.f32 %v289, 0.5
    %v292 = vmul.f32 %v290, 0.5
    %v293 = vadd.f32 %v291, 0.5
    %v294 = vadd.f32 %v292, 0.5
    %v295 = vpack.c.bf16 %v294, %v293
    %v297 = vunpack.c.l.b16 %v295
    %v298 = vunpack.c.h.b16 %v295
    %v299 = vpack.c.b16 %v297, %v297
    %v300 = vpack.c.b16 %v298, %v298
    %303 = vst [vmem:[#allocation9] sm:$0xf] %v299
    %304 = vst [vmem:[#allocation9 + $0x4] sm:$0xf] %v300
    // Predicated region
    $region46: #{tpu_custom_call.1} parent=1 // pred_check
      _
    $region47: #{tpu_custom_call.1} parent=1 // pred_check_branch
      %306 = sbr.rel (0) target = $region49
    $region48: #{tpu_custom_call.1} parent=1 // pred_region
      %s308 = ssub.s32 128, 128
      %309 = vsyncadd [#allocation5], %s308
      %s310 = sshll.u32 [#allocation9], 4
      %s311 = int_to_ptr.vmem [resolvable:$true] %s310
      %316 = dma.vmem_to_hbm [thread:$0]  %s311, 128, %s7, [#allocation5], 64, 64, 4
    $region49: #{tpu_custom_call.1} parent=1 // pred_fallthru
      _
    // Predicated region
    $region50: #{tpu_custom_call.1} parent=1 // pred_check
      _
    $region51: #{tpu_custom_call.1} parent=1 // pred_check_branch
      %318 = sbr.rel (0) target = $region53
    $region52: #{tpu_custom_call.1} parent=1 // pred_region
      %319 = dma.done [#allocation5], 128
    $region53: #{tpu_custom_call.1} parent=1 // pred_fallthru
      _
    %320 = vsyncpa [#allocation4], 1
    %321 = vsyncpa [#allocation7], 1
    %322 = vsyncpa [#allocation5], 1

</llo_original>
